<compile_context>
chip_gen: v7x
topology: tpu7x:2x2x1
jax: 0.10.0
libtpu: 0.0.40
codegen_flags: <defaults>
</compile_context>

<pallas_src>
import functools

import numpy as np

import jax
import jax.numpy as jnp
from jax.experimental import pallas as pl
from jax.experimental.pallas import tpu as pltpu


def _identity_kernel(x_ref, o_ref):
    # Pure pass-through: the entire "forward" of the abstract BaseModel.
    o_ref[...] = x_ref[...]


def _sublane_multiple(dtype) -> int:
    """Packed-sublane tile multiple for the dtype (8 f32 / 16 bf16 / 32 int8)."""
    itemsize = jnp.dtype(dtype).itemsize
    if itemsize >= 4:
        return 8
    if itemsize == 2:
        return 16
    return 32


def _round_up(a: int, b: int) -> int:
    return ((a + b - 1) // b) * b


def _tiled_identity_2d(x2d: jax.Array, block_rows: int) -> jax.Array:
    """Row-tiled identity copy of a 2-D slab (last dim kept at full extent)."""
    rows, cols = x2d.shape
    itemsize = jnp.dtype(x2d.dtype).itemsize
    total_bytes = rows * cols * itemsize
    grid = (pl.cdiv(rows, block_rows),)
    return pl.pallas_call(
        _identity_kernel,
        out_shape=jax.ShapeDtypeStruct(x2d.shape, x2d.dtype),
        grid=grid,
        in_specs=[pl.BlockSpec((block_rows, cols), lambda i: (i, 0))],
        out_specs=pl.BlockSpec((block_rows, cols), lambda i: (i, 0)),
        # Output aliases the input HBM buffer: identity needs no new buffer.
        input_output_aliases={0: 0},
        # Pure bandwidth op: 0 flops, 2x bytes (read + write).
        cost_estimate=pl.CostEstimate(
            flops=0, transcendentals=0, bytes_accessed=2 * total_bytes),
        compiler_params=pltpu.CompilerParams(
            dimension_semantics=("parallel",),
            vmem_limit_bytes=48 * 1024 * 1024,
        ),
    )(x2d)


@functools.partial(jax.jit, donate_argnums=0)
def base_model_forward(x: jax.Array) -> jax.Array:
    """Forward pass of BaseModel (identity), run through a Pallas TPU kernel.

    The input buffer is donated (donate_argnums=0) so the aliased pallas
    output can bind to the caller's buffer without a defensive copy; callers
    must not reuse `x` after the call.

    Args:
      x: NCHW tensor (any float/int dtype).
    Returns:
      Tensor identical to x (same shape, dtype, values).
    """
    orig_shape = x.shape
    dtype = x.dtype
    itemsize = jnp.dtype(dtype).itemsize

    # Layout-trivial 2-D flatten: never touch the minor (lane) dimension.
    if x.ndim == 0:
        x2d = x.reshape(1, 1)
    elif x.ndim == 1:
        x2d = x.reshape(1, orig_shape[0])
    else:
        cols = orig_shape[-1]
        x2d = x.reshape(x.size // cols, cols)

    rows, cols = x2d.shape
    sub = _sublane_multiple(dtype)

    if rows <= sub:
        # Tiny tensor: single full-extent block (exempt from (8,128) rule).
        block_rows = rows
    else:
        # Size blocks off the *padded* lane width so cols<128 cannot inflate
        # the VMEM footprint; target ~8 MiB per block, double-buffered in+out
        # stays under the 48 MiB limit (and v7x's 64 MiB physical VMEM).
        # NOTE: assumes sub rows x round_up(cols,128) fits VMEM (true for any
        # realistic model activation; extremely wide rows would need col tiling).
        cols_phys = _round_up(cols, 128)
        target_block_bytes = 8 * 1024 * 1024
        br = max(sub, target_block_bytes // (cols_phys * itemsize))
        br = (br // sub) * sub
        # Keep the grid >= 2 steps so "parallel" can shard across v7x's 2 TCs.
        half = _round_up((rows + 1) // 2, sub)
        block_rows = max(sub, min(br, half))

    out2d = _tiled_identity_2d(x2d, block_rows)
    return out2d.reshape(orig_shape)


if __name__ == "__main__":
    key = jax.random.PRNGKey(0)
    # Small NCHW input consistent with a typical vision BaseModel subclass.
    x = jax.random.normal(key, (2, 4, 16, 16), dtype=jnp.float32)
    # x is donated into the kernel; keep a host copy for the correctness check.
    x_host = np.asarray(jax.device_get(x))

    y = base_model_forward(x)
    jax.block_until_ready(y)

    assert y.shape == x_host.shape and y.dtype == x_host.dtype
    assert np.array_equal(np.asarray(jax.device_get(y)), x_host)

    print("KERNEL_OK")
</pallas_src>

<mosaic_0001>
module attributes {stable_mosaic.version = 11 : i64} {
  func.func @_identity_kernel(%arg0: i32, %arg1: memref<64x16xf32, #tpu.memory_space<vmem>>, %arg2: memref<64x16xf32, #tpu.memory_space<vmem>>) attributes {dimension_semantics = [#tpu.dimension_semantics<parallel>], iteration_bounds = array<i64: 2>, scalar_prefetch = 0 : i64, scratch_operands = 0 : i64, tpu.core_type = #tpu.core_type<tc>, window_params = [{transform_indices = @transform_0, window_bounds = array<i64: 64, 16>}, {transform_indices = @transform_1, window_bounds = array<i64: 64, 16>}]} {
    %c0 = arith.constant 0 : index
    %c0_0 = arith.constant 0 : index
    %0 = vector.load %arg1[%c0, %c0_0] : memref<64x16xf32, #tpu.memory_space<vmem>>, vector<64x16xf32>
    %c0_1 = arith.constant 0 : index
    %c0_2 = arith.constant 0 : index
    %1 = vector.load %arg2[%c0_1, %c0_2] : memref<64x16xf32, #tpu.memory_space<vmem>>, vector<64x16xf32>
    tpu.vector_store %arg2[%c0_1, %c0_2], %0 {strides = array<i32>} : memref<64x16xf32, #tpu.memory_space<vmem>>, vector<64x16xf32>,
    return
  }
  func.func @transform_0(%arg0: i32) -> (i32, i32) {
    %c0_i32 = arith.constant 0 : i32
    %c0_i32_0 = arith.constant 0 : i32
    return %arg0, %c0_i32 : i32, i32
  }
  func.func @transform_1(%arg0: i32) -> (i32, i32) {
    %c0_i32 = arith.constant 0 : i32
    %c0_i32_0 = arith.constant 0 : i32
    return %arg0, %c0_i32 : i32, i32
  }
}

</mosaic_0001>

<llo_original>
// kernel: base_model_forward.1
$region0: #{base_model_forward.1}
  #allocation0 [shape = 'u32[]', space=smem, size = 0x4, offset = 0x4, fixed_abs, tag = 'smem constant byte address 0x4 - core index']
  #allocation1 [shape = 'u32[144,128]{1,0:T(1,128)}', space=vmem, size = 0x12000, scoped, tag = 'internal scratch']
  %s0 = inlined_call_operand.hbm [shape: f32[128,16], index: 0, kind: input, shape index: {}, may-alias: {0,1}]
  %s1 = inlined_call_operand.hbm [shape: f32[128,16], index: 1, kind: output, shape index: {}, may-alias: {0,1}]
  %s2 = sld [smem:[#allocation0]]
  $region41: #{base_model_forward.1} parent=0
    _
  %s4 = ssub.s32 1, %s2
  %s5 = scalar_select 0, %s4, %s2
  $region1: #{base_model_forward.1} parent=0
    #allocation2 [shape = 'u8[65536]{0}', space=vmem, size = 0x10000, scoped, tag = 'input window, operand 0']
    #allocation3 [shape = 's32[2]{0}', space=sflag, size = 0x8, scoped, tag = 'scoped memory for base_model_forward.1']
    #allocation4 [shape = 's32[2]{0}', space=sflag, size = 0x8, scoped, tag = 'scoped memory for base_model_forward.1']
    #allocation5 [shape = 'u8[65536]{0}', space=vmem, size = 0x10000, scoped, tag = 'output window, operand 0']
    %6 = vsyncpa [#allocation3], 0
    %s7 = scalar_lea.sflag [#allocation3], 1
    %8 = vsyncpa %s7, 0
    %9 = vsyncpa [#allocation4], 0
    %s10 = scalar_lea.sflag [#allocation4], 1
    %11 = vsyncpa %s10, 0
    loop: start=0, step=1, limit=4
    $region2: #{base_model_forward.1} parent=1 // loop_pre_header
      _
    $region3: #{base_model_forward.1} parent=1 // loop_header
      %s13 = sphi 0, %s17
      %p14 = scmp.ge.s32.totalorder %s13, 4
      %s23 = sphi 0, %s25
      %s26 = sphi 0, %s23
      %s27 = sphi 0, %s26
      %s43 = sphi 0, %s27
      %s49 = sphi 0, %s51
      %s52 = sphi 0, %s49
      %s53 = sphi 0, %s52
      %s69 = sphi 0, %s53
    $region4: #{base_model_forward.1} parent=1 // loop_header_branch
      %16 = sbr.rel (%p14) target = $region8
    $region5: #{base_model_forward.1} parent=1 // loop_body
      %s18 = ssub.s32 %s13, 1
      %s19 = ssub.s32 %s13, 2
      %s20 = sadd.s32 %s13, 1
      %s21 = ssub.s32 %s13, %s20
      %p22 = scmp.eq.s32.totalorder %s21, 0
      %s24 = sadd.s32 %s23, 1
      %s25 = scalar_select %p22, %s23, %s24
      %p28 = pneg %p22
      %p29 = scmp.eq.s32.totalorder %s13, 1
      %p30 = por %p28, %p29
      %p31 = scmp.ne.s32.totalorder %s23, %s26
      %p32 = scmp.eq.s32.totalorder %s13, 0
      %p33 = por %p31, %p32
      %p34 = scmp.ne.s32.totalorder %s23, %s26
      %p35 = scmp.eq.s32.totalorder %s18, 1
      %p36 = por %p34, %p35
      %p37 = scmp.ne.s32.totalorder %s26, %s27
      %p38 = scmp.eq.s32.totalorder %s18, 0
      %p39 = por %p37, %p38
      %p40 = scmp.ne.s32.totalorder %s26, %s27
      %p41 = scmp.eq.s32.totalorder %s19, 1
      %p42 = por %p40, %p41
      %p44 = scmp.ne.s32.totalorder %s27, %s43
      %p45 = scmp.eq.s32.totalorder %s19, 0
      %p46 = por %p44, %p45
      %s47 = ssub.s32 %s13, %s20
      %p48 = scmp.eq.s32.totalorder %s47, 0
      %s50 = sadd.s32 %s49, 1
      %s51 = scalar_select %p48, %s49, %s50
      %p54 = pneg %p48
      %p55 = scmp.eq.s32.totalorder %s13, 1
      %p56 = por %p54, %p55
      %p57 = scmp.ne.s32.totalorder %s49, %s52
      %p58 = scmp.eq.s32.totalorder %s13, 0
      %p59 = por %p57, %p58
      %p60 = scmp.ne.s32.totalorder %s49, %s52
      %p61 = scmp.eq.s32.totalorder %s18, 1
      %p62 = por %p60, %p61
      %p63 = scmp.ne.s32.totalorder %s52, %s53
      %p64 = scmp.eq.s32.totalorder %s18, 0
      %p65 = por %p63, %p64
      %p66 = scmp.ne.s32.totalorder %s52, %s53
      %p67 = scmp.eq.s32.totalorder %s19, 1
      %p68 = por %p66, %p67
      %p70 = scmp.ne.s32.totalorder %s53, %s69
      %p71 = scmp.eq.s32.totalorder %s19, 0
      %p72 = por %p70, %p71
      %p73 = scmp.le.s32.totalorder 1, %s13
      %p74 = scmp.lt.s32.totalorder %s13, 3
      %p75 = pnand %p73, %p74
      %p76 = pneg %p75
      // Predicated region
      $region9: #{base_model_forward.1} parent=5 // pred_check
        _
      $region10: #{base_model_forward.1} parent=5 // pred_check_branch
        %78 = sbr.rel (%p75) target = $region12
      $region11: #{base_model_forward.1} parent=5 // pred_region
        %s79 = ssub.s32 %s13, 1
      $region12: #{base_model_forward.1} parent=5 // pred_fallthru
        _
      %p80 = scmp.lt.s32.totalorder %s13, 2
      // Predicated region
      $region13: #{base_model_forward.1} parent=5 // pred_check
        %p81 = pneg %p80
      $region14: #{base_model_forward.1} parent=5 // pred_check_branch
        %83 = sbr.rel (%p81) target = $region16
      $region15: #{base_model_forward.1} parent=5 // pred_region
        // Predicated region
        $region17: #{base_model_forward.1} parent=15 // pred_check
          %p84 = pneg %p33
        $region18: #{base_model_forward.1} parent=15 // pred_check_branch
          %86 = sbr.rel (%p84) target = $region20
        $region19: #{base_model_forward.1} parent=15 // pred_region
          %s87 = sand.u32 %s23, 1
          %s88 = scalar_lea.sflag [#allocation3], %s87
          %s89 = sand.u32 %s23, 1
          %s90 = smul.addr %s89, 64
          %s91 = scalar_lea.vmem [#allocation2], %s90
          %s92 = smul.u32 8, %s13
          %s94 = ssub.s32 1024, 1024
          %95 = vsyncadd %s88, %s94
          %s96 = smul.addr %s92, 128
          %s97 = scalar_lea.hbm %s0, %s96
          %s98 = sshll.u32 %s91, 4
          %s99 = int_to_ptr.vmem [resolvable:$true] %s98
          %104 = dma.hbm_to_vmem [thread:$0]  %s97, 1024, %s99, %s88, 128, 128, 8
        $region20: #{base_model_forward.1} parent=15 // pred_fallthru
          _
      $region16: #{base_model_forward.1} parent=5 // pred_fallthru
        _
      %p105 = scmp.le.s32.totalorder 1, %s13
      %p106 = scmp.lt.s32.totalorder %s13, 3
      %p107 = pnand %p105, %p106
      %p108 = pneg %p107
      // Predicated region
      $region21: #{base_model_forward.1} parent=5 // pred_check
        _
      $region22: #{base_model_forward.1} parent=5 // pred_check_branch
        %110 = sbr.rel (%p107) target = $region24
      $region23: #{base_model_forward.1} parent=5 // pred_region
        %s111 = ssub.s32 %s13, 1
        %s112 = sand.u32 %s26, 1
        %s113 = scalar_lea.sflag [#allocation3], %s112
        %s114 = sand.u32 %s26, 1
        %s115 = smul.addr %s114, 64
        %s116 = scalar_lea.vmem [#allocation2], %s115
        // Predicated region
        $region25: #{base_model_forward.1} parent=23 // pred_check
          %p117 = pneg %p39
        $region26: #{base_model_forward.1} parent=23 // pred_check_branch
          %119 = sbr.rel (%p117) target = $region28
        $region27: #{base_model_forward.1} parent=23 // pred_region
          %120 = dma.done %s113, 1024
        $region28: #{base_model_forward.1} parent=23 // pred_fallthru
          _
        %s121 = sand.u32 %s26, 1
        %s122 = scalar_lea.sflag [#allocation3], %s121
        %s123 = sand.u32 %s26, 1
        %s124 = smul.addr %s123, 64
        %s125 = scalar_lea.vmem [#allocation2], %s124
        %p126 = pneg %p39
        %p127 = pneg %p36
        %p128 = pneg %p65
        %p129 = pneg %p62
        %s130 = sand.u32 %s52, 1
        %s131 = scalar_lea.sflag [#allocation4], %s130
        %s132 = sand.u32 %s52, 1
        %s133 = smul.addr %s132, 64
        %s134 = scalar_lea.vmem [#allocation5], %s133
        %s135 = smul.u32 8, %s18
        %s136 = smul.u32 8, %s18
        %v137 = vld [vmem:[%s116] sm:$0xff]
        %v138 = vld [vmem:[%s116 + $0x8] sm:$0xff]
        %v139 = vld [vmem:[%s116 + $0x10] sm:$0xff]
        %v140 = vld [vmem:[%s116 + $0x18] sm:$0xff]
        %v141 = vld [vmem:[%s116 + $0x20] sm:$0xff]
        %v142 = vld [vmem:[%s116 + $0x28] sm:$0xff]
        %v143 = vld [vmem:[%s116 + $0x30] sm:$0xff]
        %v144 = vld [vmem:[%s116 + $0x38] sm:$0xff]
        %vm145 = vcmask 130048
        %146 = vst.msk [vmem:[%s134] sm:$0xff] %vm145, %v137
        %147 = vst.msk [vmem:[%s134 + $0x8] sm:$0xff] %vm145, %v138
        %148 = vst.msk [vmem:[%s134 + $0x10] sm:$0xff] %vm145, %v139
        %149 = vst.msk [vmem:[%s134 + $0x18] sm:$0xff] %vm145, %v140
        %150 = vst.msk [vmem:[%s134 + $0x20] sm:$0xff] %vm145, %v141
        %151 = vst.msk [vmem:[%s134 + $0x28] sm:$0xff] %vm145, %v142
        %152 = vst.msk [vmem:[%s134 + $0x30] sm:$0xff] %vm145, %v143
        %153 = vst.msk [vmem:[%s134 + $0x38] sm:$0xff] %vm145, %v144
        %s154 = sand.u32 %s52, 1
        %s155 = scalar_lea.sflag [#allocation4], %s154
        %s156 = sand.u32 %s52, 1
        %s157 = smul.addr %s156, 64
        %s158 = scalar_lea.vmem [#allocation5], %s157
        // Predicated region
        $region29: #{base_model_forward.1} parent=23 // pred_check
          %p159 = pneg %p62
        $region30: #{base_model_forward.1} parent=23 // pred_check_branch
          %161 = sbr.rel (%p159) target = $region32
        $region31: #{base_model_forward.1} parent=23 // pred_region
          %s162 = smul.u32 8, %s18
          %s164 = ssub.s32 1024, 1024
          %165 = vsyncadd %s155, %s164
          %s166 = smul.addr %s162, 128
          %s167 = scalar_lea.hbm %s1, %s166
          %s168 = sshll.u32 %s158, 4
          %s169 = int_to_ptr.vmem [resolvable:$true] %s168
          %174 = dma.vmem_to_hbm [thread:$0]  %s169, 1024, %s167, %s155, 128, 128, 8
        $region32: #{base_model_forward.1} parent=23 // pred_fallthru
          _
      $region24: #{base_model_forward.1} parent=5 // pred_fallthru
        _
      %p175 = scmp.le.s32.totalorder 2, %s13
      // Predicated region
      $region33: #{base_model_forward.1} parent=5 // pred_check
        %p176 = pneg %p175
      $region34: #{base_model_forward.1} parent=5 // pred_check_branch
        %178 = sbr.rel (%p176) target = $region36
      $region35: #{base_model_forward.1} parent=5 // pred_region
        %s179 = ssub.s32 %s13, 2
        // Predicated region
        $region37: #{base_model_forward.1} parent=35 // pred_check
          %p180 = pneg %p68
        $region38: #{base_model_forward.1} parent=35 // pred_check_branch
          %182 = sbr.rel (%p180) target = $region40
        $region39: #{base_model_forward.1} parent=35 // pred_region
          %s183 = sand.u32 %s53, 1
          %s184 = scalar_lea.sflag [#allocation4], %s183
          %s185 = sand.u32 %s53, 1
          %s186 = smul.addr %s185, 64
          %s187 = scalar_lea.vmem [#allocation5], %s186
          %188 = dma.done %s184, 1024
        $region40: #{base_model_forward.1} parent=35 // pred_fallthru
          _
      $region36: #{base_model_forward.1} parent=5 // pred_fallthru
        _
    $region6: #{base_model_forward.1} parent=1 // loop_footer
      %s17 = sadd.s32 1, %s13
    $region7: #{base_model_forward.1} parent=1 // loop_footer_branch
      %12 = sbr.rel target = $region3
    $region8: #{base_model_forward.1} parent=1 // loop_exit
      _
    %189 = vsyncpa [#allocation3], 1
    %s190 = scalar_lea.sflag [#allocation3], 1
    %191 = vsyncpa %s190, 1
    %192 = vsyncpa [#allocation4], 1
    %s193 = scalar_lea.sflag [#allocation4], 1
    %194 = vsyncpa %s193, 1

</llo_original>
